<compile_context>
chip_gen: v5e
topology: v5e:2x2
jax: 0.10.0
libtpu: 0.0.40
codegen_flags: <defaults>
</compile_context>

<pallas_src>
import jax
import jax.numpy as jnp
from jax.experimental import pallas as pl
from jax.experimental.pallas import tpu as pltpu


def _round_up(x, m):
    return (x + m - 1) // m * m


def attention_kernel(lens_ref, q_ref, wqT_ref, v_ref, pmT_ref, mem_ref,
                     ctx_ref, w_ref):
    # Per-batch-element refs (grid is over B):
    #   lens_ref (B,) int32 in SMEM (scalar prefetch)
    #   q_ref    (Drnn, 1)      wqT_ref (A, Drnn)     v_ref (1, A)
    #   pmT_ref  (A, T_pad)     mem_ref (T_pad, E_pad)
    #   ctx_ref  (1, E_pad)     w_ref   (1, T_pad)
    b = pl.program_id(0)
    length = lens_ref[b]
    t_pad = w_ref.shape[-1]

    # processed_query as a column: (A, 1) = (A, Drnn) @ (Drnn, 1)        [MXU]
    pq = jnp.dot(wqT_ref[...], q_ref[...], preferred_element_type=jnp.float32)

    # tanh(processed_query + processed_memory) in (A, T_pad) layout      [VPU+EUP]
    s = jnp.tanh(pq + pmT_ref[...])

    # energies (1, T_pad) = v (1, A) @ s (A, T_pad)  -- lane-dense       [MXU]
    energies = jnp.dot(v_ref[...], s, preferred_element_type=jnp.float32)

    # masked_fill_(mask, -inf): mask built in-kernel from the sequence length.
    # -1e30 matches -inf numerically (exp underflows to 0) without NaN risk.
    t_idx = jax.lax.broadcasted_iota(jnp.int32, (1, t_pad), 1)
    masked = jnp.where(t_idx >= length, jnp.float32(-1e30), energies)

    # softmax over time (lane axis)
    m = jnp.max(masked, axis=-1, keepdims=True)
    p = jnp.exp(masked - m)
    denom = jnp.sum(p, axis=-1, keepdims=True)
    inv = pl.reciprocal(denom, approx=True)          # EUP slot
    inv = inv * (2.0 - denom * inv)                  # one Newton step -> f32 accuracy
    attn_w = p * inv
    w_ref[...] = attn_w

    # attention_context (1, E_pad) = attn_w (1, T_pad) @ memory (T_pad, E_pad)  [MXU]
    ctx_ref[...] = jnp.dot(attn_w, mem_ref[...],
                           preferred_element_type=jnp.float32).astype(ctx_ref.dtype)


def prepare_attention_memory(memory, processed_memory):
    """Pad/transpose the per-utterance constant tensors ONCE (outside the
    decoder-step loop) into the lane-dense layouts the kernel expects."""
    B, T, E = memory.shape
    A = processed_memory.shape[-1]
    T_pad = _round_up(T, 128)
    E_pad = _round_up(E, 128)
    mem_pad = jnp.pad(memory, ((0, 0), (0, T_pad - T), (0, E_pad - E)))
    pm_T = jnp.swapaxes(processed_memory, 1, 2)                 # (B, A, T)
    pm_T = jnp.pad(pm_T, ((0, 0), (0, 0), (0, T_pad - T)))       # (B, A, T_pad)
    return mem_pad, pm_T


def attention_forward(query, mem_pad, pm_T, lengths, w_query, v, *, T, E):
    """Run one attention step. Returns (attention_context (B,E),
    attention_weights (B,T))."""
    B, T_pad, E_pad = mem_pad.shape
    A = pm_T.shape[1]
    Drnn = query.shape[1]

    q3 = query[:, :, None]                   # (B, Drnn, 1)
    wqT = w_query.T                          # (A, Drnn)
    v_row = v.reshape(1, A)                  # (1, A)
    lens_i = lengths.astype(jnp.int32)       # (B,)

    grid_spec = pltpu.PrefetchScalarGridSpec(
        num_scalar_prefetch=1,
        grid=(B,),
        in_specs=[
            pl.BlockSpec((None, Drnn, 1), lambda b, lens: (b, 0, 0)),      # query
            pl.BlockSpec((A, Drnn), lambda b, lens: (0, 0)),               # W_q^T
            pl.BlockSpec((1, A), lambda b, lens: (0, 0)),                  # v
            pl.BlockSpec((None, A, T_pad), lambda b, lens: (b, 0, 0)),     # pm^T
            pl.BlockSpec((None, T_pad, E_pad), lambda b, lens: (b, 0, 0)),  # memory
        ],
        out_specs=(
            pl.BlockSpec((None, 1, E_pad), lambda b, lens: (b, 0, 0)),     # context
            pl.BlockSpec((None, 1, T_pad), lambda b, lens: (b, 0, 0)),     # weights
        ),
    )

    ctx_p, w_p = pl.pallas_call(
        attention_kernel,
        out_shape=(jax.ShapeDtypeStruct((B, 1, E_pad), jnp.float32),
                   jax.ShapeDtypeStruct((B, 1, T_pad), jnp.float32)),
        grid_spec=grid_spec,
        compiler_params=pltpu.CompilerParams(
            dimension_semantics=("parallel",)),
    )(lens_i, q3, wqT, v_row, pm_T, mem_pad)

    ctx = ctx_p[:, 0, :E]
    attn_w = w_p[:, 0, :T]
    return ctx, attn_w


def attention_reference(query, memory, processed_memory, mask, w_query, v):
    pq = query @ w_query                                      # (B, A)
    s = jnp.tanh(pq[:, None, :] + processed_memory)           # (B, T, A)
    energies = jnp.sum(s * v[None, None, :, 0], axis=-1)      # (B, T)
    energies = jnp.where(mask, -jnp.inf, energies)
    w = jax.nn.softmax(energies, axis=1)
    ctx = jnp.einsum('bt,bte->be', w, memory)
    return ctx, w


if __name__ == "__main__":
    # Small shapes consistent with the module. Encoder dim is 416 per the
    # (unused-in-forward) memory_layer.
    B, T = 2, 8
    attention_rnn_dim = 32
    attention_dim = 16
    encoder_dim = 416

    key = jax.random.PRNGKey(0)
    k_q, k_mem, k_pm, k_wq, k_v = jax.random.split(key, 5)

    query = jax.random.normal(k_q, (B, attention_rnn_dim), jnp.float32)
    memory = jax.random.normal(k_mem, (B, T, encoder_dim), jnp.float32)
    processed_memory = jax.random.normal(k_pm, (B, T, attention_dim), jnp.float32)

    # Deterministic "xavier-ish" init for the LinearNorm weights.
    w_query = jax.random.uniform(
        k_wq, (attention_rnn_dim, attention_dim), jnp.float32,
        minval=-0.2, maxval=0.2)
    v = jax.random.uniform(
        k_v, (attention_dim, 1), jnp.float32, minval=-0.3, maxval=0.3)

    # Sequence lengths (the binary padding mask is derived from these).
    lengths = jnp.array([8, 6], dtype=jnp.int32)

    # One-time layout prep (per utterance), then the per-step kernel call.
    mem_pad, pm_T = prepare_attention_memory(memory, processed_memory)
    ctx, attn_w = attention_forward(query, mem_pad, pm_T, lengths, w_query, v,
                                    T=T, E=encoder_dim)
    jax.block_until_ready((ctx, attn_w))

    # Reference (PyTorch semantics: mask True = padded -> -inf).
    mask = jnp.arange(T)[None, :] >= lengths[:, None]          # (B, T) bool
    ctx_ref, w_ref = attention_reference(query, memory, processed_memory, mask,
                                         w_query, v)

    assert ctx.shape == (B, encoder_dim) and attn_w.shape == (B, T)
    assert jnp.allclose(ctx, ctx_ref, atol=1e-4, rtol=1e-4)
    assert jnp.allclose(attn_w, w_ref, atol=1e-4, rtol=1e-4)

    print("KERNEL_OK")
</pallas_src>

<mosaic_0001>
module attributes {stable_mosaic.version = 11 : i64} {
  func.func @attention_kernel(%arg0: i32, %arg1: memref<2xi32, #tpu.memory_space<smem>>, %arg2: memref<1x32x1xf32, #tpu.memory_space<vmem>>, %arg3: memref<16x32xf32, #tpu.memory_space<vmem>>, %arg4: memref<1x16xf32, #tpu.memory_space<vmem>>, %arg5: memref<1x16x128xf32, #tpu.memory_space<vmem>>, %arg6: memref<1x128x512xf32, #tpu.memory_space<vmem>>, %arg7: memref<1x1x512xf32, #tpu.memory_space<vmem>>, %arg8: memref<1x1x128xf32, #tpu.memory_space<vmem>>) attributes {dimension_semantics = [#tpu.dimension_semantics<parallel>], iteration_bounds = array<i64: 2>, scalar_prefetch = 1 : i64, scratch_operands = 0 : i64, tpu.core_type = #tpu.core_type<tc>, window_params = [{transform_indices = @transform_0, window_bounds = array<i64: 1, 32, 1>}, {pipeline_mode = #tpu.pipeline_mode<synchronous>, transform_indices = @transform_1, window_bounds = array<i64: 16, 32>}, {pipeline_mode = #tpu.pipeline_mode<synchronous>, transform_indices = @transform_2, window_bounds = array<i64: 1, 16>}, {transform_indices = @transform_3, window_bounds = array<i64: 1, 16, 128>}, {transform_indices = @transform_4, window_bounds = array<i64: 1, 128, 512>}, {transform_indices = @transform_5, window_bounds = array<i64: 1, 1, 512>}, {transform_indices = @transform_6, window_bounds = array<i64: 1, 1, 128>}]} {
    %0 = arith.index_cast %arg0 : i32 to index
    %1 = memref.load %arg1[%0] : memref<2xi32, #tpu.memory_space<smem>>
    %c0 = arith.constant 0 : index
    %c0_0 = arith.constant 0 : index
    %2 = vector.load %arg3[%c0, %c0_0] : memref<16x32xf32, #tpu.memory_space<vmem>>, vector<16x32xf32>
    %c0_1 = arith.constant 0 : index
    %c0_2 = arith.constant 0 : index
    %c0_3 = arith.constant 0 : index
    %3 = vector.load %arg2[%c0_1, %c0_2, %c0_3] : memref<1x32x1xf32, #tpu.memory_space<vmem>>, vector<1x32x1xf32>
    %4 = vector.shape_cast %3 : vector<1x32x1xf32> to vector<32x1xf32>
    %cst = arith.constant dense<0.000000e+00> : vector<16x1xf32>
    %5 = tpu.matmul %2, %4, %cst {dimension_numbers = #tpu.dot_dimension_numbers<[1], [0], [0], [1], [0, 0, 1, 1], [], []>} : vector<16x32xf32>, vector<32x1xf32>, vector<16x1xf32> -> vector<16x1xf32>
    %c0_4 = arith.constant 0 : index
    %c0_5 = arith.constant 0 : index
    %c0_6 = arith.constant 0 : index
    %6 = vector.load %arg5[%c0_4, %c0_5, %c0_6] : memref<1x16x128xf32, #tpu.memory_space<vmem>>, vector<1x16x128xf32>
    %7 = vector.shape_cast %6 : vector<1x16x128xf32> to vector<16x128xf32>
    %8 = vector.broadcast %5 : vector<16x1xf32> to vector<16x128xf32>
    %9 = arith.addf %8, %7 : vector<16x128xf32>
    %10 = math.tanh %9 : vector<16x128xf32>
    %c0_7 = arith.constant 0 : index
    %c0_8 = arith.constant 0 : index
    %11 = vector.load %arg4[%c0_7, %c0_8] : memref<1x16xf32, #tpu.memory_space<vmem>>, vector<1x16xf32>
    %cst_9 = arith.constant dense<0.000000e+00> : vector<1x128xf32>
    %12 = tpu.matmul %11, %10, %cst_9 {dimension_numbers = #tpu.dot_dimension_numbers<[1], [0], [0], [1], [0, 0, 1, 1], [], []>} : vector<1x16xf32>, vector<16x128xf32>, vector<1x128xf32> -> vector<1x128xf32>
    %13 = tpu.iota {dimensions = array<i32: 1>} : vector<1x128xi32>
    %14 = vector.broadcast %1 : i32 to vector<1x128xi32>
    %15 = arith.cmpi sge, %13, %14 : vector<1x128xi32>
    %cst_10 = arith.constant -1.000000e+30 : f32
    %16 = vector.broadcast %cst_10 : f32 to vector<1x128xf32>
    %17 = arith.select %15, %16, %12 : vector<1x128xi1>, vector<1x128xf32>
    %cst_11 = arith.constant dense<0xFF800000> : vector<1xf32>
    %18 = vector.multi_reduction <maximumf>, %17, %cst_11 [1] : vector<1x128xf32> to vector<1xf32>
    %19 = vector.shape_cast %18 : vector<1xf32> to vector<1x1xf32>
    %20 = vector.broadcast %19 : vector<1x1xf32> to vector<1x128xf32>
    %21 = arith.subf %17, %20 : vector<1x128xf32>
    %22 = math.exp %21 : vector<1x128xf32>
    %cst_12 = arith.constant dense<0.000000e+00> : vector<1xf32>
    %23 = vector.multi_reduction <add>, %22, %cst_12 [1] : vector<1x128xf32> to vector<1xf32>
    %24 = vector.shape_cast %23 : vector<1xf32> to vector<1x1xf32>
    %25 = tpu.reciprocal %24 {approx = true} : vector<1x1xf32> -> vector<1x1xf32>
    %26 = arith.mulf %24, %25 : vector<1x1xf32>
    %cst_13 = arith.constant 2.000000e+00 : f32
    %27 = vector.broadcast %cst_13 : f32 to vector<1x1xf32>
    %28 = arith.subf %27, %26 : vector<1x1xf32>
    %29 = arith.mulf %25, %28 : vector<1x1xf32>
    %30 = vector.broadcast %29 : vector<1x1xf32> to vector<1x128xf32>
    %31 = arith.mulf %22, %30 : vector<1x128xf32>
    %c0_14 = arith.constant 0 : index
    %c0_15 = arith.constant 0 : index
    %c0_16 = arith.constant 0 : index
    %32 = vector.load %arg8[%c0_14, %c0_15, %c0_16] : memref<1x1x128xf32, #tpu.memory_space<vmem>>, vector<1x1x128xf32>
    %33 = vector.shape_cast %32 : vector<1x1x128xf32> to vector<1x128xf32>
    %34 = vector.shape_cast %31 : vector<1x128xf32> to vector<1x1x128xf32>
    tpu.vector_store %arg8[%c0_14, %c0_15, %c0_16], %34 {strides = array<i32>} : memref<1x1x128xf32, #tpu.memory_space<vmem>>, vector<1x1x128xf32>,
    %c0_17 = arith.constant 0 : index
    %c0_18 = arith.constant 0 : index
    %c0_19 = arith.constant 0 : index
    %35 = vector.load %arg6[%c0_17, %c0_18, %c0_19] : memref<1x128x512xf32, #tpu.memory_space<vmem>>, vector<1x128x512xf32>
    %36 = vector.shape_cast %35 : vector<1x128x512xf32> to vector<128x512xf32>
    %cst_20 = arith.constant dense<0.000000e+00> : vector<1x512xf32>
    %37 = tpu.matmul %31, %36, %cst_20 {dimension_numbers = #tpu.dot_dimension_numbers<[1], [0], [0], [1], [0, 0, 1, 1], [], []>} : vector<1x128xf32>, vector<128x512xf32>, vector<1x512xf32> -> vector<1x512xf32>
    %c0_21 = arith.constant 0 : index
    %c0_22 = arith.constant 0 : index
    %c0_23 = arith.constant 0 : index
    %38 = vector.load %arg7[%c0_21, %c0_22, %c0_23] : memref<1x1x512xf32, #tpu.memory_space<vmem>>, vector<1x1x512xf32>
    %39 = vector.shape_cast %38 : vector<1x1x512xf32> to vector<1x512xf32>
    %40 = vector.shape_cast %37 : vector<1x512xf32> to vector<1x1x512xf32>
    tpu.vector_store %arg7[%c0_21, %c0_22, %c0_23], %40 {strides = array<i32>} : memref<1x1x512xf32, #tpu.memory_space<vmem>>, vector<1x1x512xf32>,
    return
  }
  func.func @transform_0(%arg0: i32, %arg1: memref<2xi32, #tpu.memory_space<smem>>) -> (i32, i32, i32) {
    %c0_i32 = arith.constant 0 : i32
    %c0_i32_0 = arith.constant 0 : i32
    %c0_i32_1 = arith.constant 0 : i32
    return %arg0, %c0_i32, %c0_i32_0 : i32, i32, i32
  }
  func.func @transform_1(%arg0: i32, %arg1: memref<2xi32, #tpu.memory_space<smem>>) -> (i32, i32) {
    %c0_i32 = arith.constant 0 : i32
    %c0_i32_0 = arith.constant 0 : i32
    %c0_i32_1 = arith.constant 0 : i32
    return %c0_i32, %c0_i32_0 : i32, i32
  }
  func.func @transform_2(%arg0: i32, %arg1: memref<2xi32, #tpu.memory_space<smem>>) -> (i32, i32) {
    %c0_i32 = arith.constant 0 : i32
    %c0_i32_0 = arith.constant 0 : i32
    %c0_i32_1 = arith.constant 0 : i32
    return %c0_i32, %c0_i32_0 : i32, i32
  }
  func.func @transform_3(%arg0: i32, %arg1: memref<2xi32, #tpu.memory_space<smem>>) -> (i32, i32, i32) {
    %c0_i32 = arith.constant 0 : i32
    %c0_i32_0 = arith.constant 0 : i32
    %c0_i32_1 = arith.constant 0 : i32
    return %arg0, %c0_i32, %c0_i32_0 : i32, i32, i32
  }
  func.func @transform_4(%arg0: i32, %arg1: memref<2xi32, #tpu.memory_space<smem>>) -> (i32, i32, i32) {
    %c0_i32 = arith.constant 0 : i32
    %c0_i32_0 = arith.constant 0 : i32
    %c0_i32_1 = arith.constant 0 : i32
    return %arg0, %c0_i32, %c0_i32_0 : i32, i32, i32
  }
  func.func @transform_5(%arg0: i32, %arg1: memref<2xi32, #tpu.memory_space<smem>>) -> (i32, i32, i32) {
    %c0_i32 = arith.constant 0 : i32
    %c0_i32_0 = arith.constant 0 : i32
    %c0_i32_1 = arith.constant 0 : i32
    return %arg0, %c0_i32, %c0_i32_0 : i32, i32, i32
  }
  func.func @transform_6(%arg0: i32, %arg1: memref<2xi32, #tpu.memory_space<smem>>) -> (i32, i32, i32) {
    %c0_i32 = arith.constant 0 : i32
    %c0_i32_0 = arith.constant 0 : i32
    %c0_i32_1 = arith.constant 0 : i32
    return %arg0, %c0_i32, %c0_i32_0 : i32, i32, i32
  }
}

</mosaic_0001>

<llo_original>
// kernel: tpu_custom_call.1
$region0: #{tpu_custom_call.1}
  #allocation0 [shape = 'u32[]', space=smem, size = 0x4, offset = 0x4, fixed_abs, tag = 'smem constant byte address 0x4 - core index']
  #allocation1 [shape = 'u32[72,128]{1,0:T(1,128)}', space=vmem, size = 0x9000, scoped, tag = 'internal scratch']
  #allocation2 [shape = 's32[1]{0}', space=sflag, size = 0x4, scoped, tag = 'scoped memory for tpu_custom_call.1']
  #allocation3 [shape = 'u8[512]{0}', space=smem, size = 0x200, scoped, tag = 'prefetched SMEM operand 0']
  %s0 = inlined_call_operand.vmem [shape: s32[2], index: 0, kind: input, shape index: {}]
  %s1 = inlined_call_operand.vmem [shape: f32[2,32,1], index: 1, kind: input, shape index: {}]
  %s2 = inlined_call_operand.vmem [shape: f32[16,32], index: 2, kind: input, shape index: {}]
  %s3 = inlined_call_operand.vmem [shape: f32[1,16], index: 3, kind: input, shape index: {}]
  %s4 = inlined_call_operand.vmem [shape: f32[2,16,128], index: 4, kind: input, shape index: {}]
  %s5 = inlined_call_operand.hbm [shape: f32[2,128,512], index: 5, kind: input, shape index: {}]
  %s6 = inlined_call_operand.hbm [shape: f32[2,1,512], index: 6, kind: output, shape index: {0}]
  %s7 = inlined_call_operand.hbm [shape: f32[2,1,128], index: 7, kind: output, shape index: {1}]
  %8 = xla_tuple %s6, %s7
  %s9 = sld [smem:[#allocation0]]
  $region65: #{tpu_custom_call.1} parent=0
    _
  %s11 = ssub.s32 1, %s9
  %s12 = scalar_select 0, %s11, %s9
  %s14 = sshll.u32 %s0, 4
  %s15 = int_to_ptr.vmem [resolvable:$true] %s14
  %17 = dma.vmem_to_smem %s15, 16, [#allocation3], [#allocation2]
  %19 = dma.done [#allocation2], 16
  %20 = sfence
  $region1: #{tpu_custom_call.1} parent=0
    #allocation4 [shape = 'u8[524288]{0}', space=vmem, size = 0x80000, scoped, tag = 'input window, operand 5']
    #allocation5 [shape = 's32[2]{0}', space=sflag, size = 0x8, scoped, tag = 'scoped memory for tpu_custom_call.1']
    #allocation6 [shape = 's32[2]{0}', space=sflag, size = 0x8, scoped, tag = 'scoped memory for tpu_custom_call.1']
    #allocation7 [shape = 'u8[4096]{0}', space=vmem, size = 0x1000, scoped, tag = 'output window, operand 0']
    #allocation8 [shape = 'u8[1024]{0}', space=vmem, size = 0x400, scoped, tag = 'output window, operand 1']
    #allocation9 [shape = 's32[2]{0}', space=sflag, size = 0x8, scoped, tag = 'scoped memory for tpu_custom_call.1']
    %21 = vsyncpa [#allocation5], 0
    %s22 = scalar_lea.sflag [#allocation5], 1
    %23 = vsyncpa %s22, 0
    %24 = vsyncpa [#allocation6], 0
    %s25 = scalar_lea.sflag [#allocation6], 1
    %26 = vsyncpa %s25, 0
    %27 = vsyncpa [#allocation9], 0
    %s28 = scalar_lea.sflag [#allocation9], 1
    %29 = vsyncpa %s28, 0
    loop: start=0, step=1, limit=4
    $region2: #{tpu_custom_call.1} parent=1 // loop_pre_header
      _
    $region3: #{tpu_custom_call.1} parent=1 // loop_header
      %s31 = sphi 0, %s35
      %p32 = scmp.ge.s32.totalorder %s31, 4
      %s41 = sphi 0, %s43
      %s44 = sphi 0, %s41
      %s45 = sphi 0, %s44
      %s61 = sphi 0, %s45
      %s65 = sphi 0, %s65
      %s67 = sphi 0, %s65
      %s68 = sphi 0, %s67
      %s82 = sphi 0, %s68
      %s86 = sphi 0, %s86
      %s88 = sphi 0, %s86
      %s89 = sphi 0, %s88
      %s103 = sphi 0, %s89
      %s109 = sphi 0, %s111
      %s112 = sphi 0, %s109
      %s113 = sphi 0, %s112
      %s129 = sphi 0, %s113
      %s135 = sphi 0, %s137
      %s138 = sphi 0, %s135
      %s139 = sphi 0, %s138
      %s155 = sphi 0, %s139
      %s161 = sphi 0, %s163
      %s164 = sphi 0, %s161
      %s165 = sphi 0, %s164
      %s181 = sphi 0, %s165
      %s187 = sphi 0, %s189
      %s190 = sphi 0, %s187
      %s191 = sphi 0, %s190
      %s207 = sphi 0, %s191
    $region4: #{tpu_custom_call.1} parent=1 // loop_header_branch
      %34 = sbr.rel (%p32) target = $region8
    $region5: #{tpu_custom_call.1} parent=1 // loop_body
      %s36 = ssub.s32 %s31, 1
      %s37 = ssub.s32 %s31, 2
      %s38 = sadd.s32 %s31, 1
      %s39 = ssub.s32 %s31, %s38
      %p40 = scmp.eq.s32.totalorder %s39, 0
      %s42 = sadd.s32 %s41, 1
      %s43 = scalar_select %p40, %s41, %s42
      %p46 = pneg %p40
      %p47 = scmp.eq.s32.totalorder %s31, 1
      %p48 = por %p46, %p47
      %p49 = scmp.ne.s32.totalorder %s41, %s44
      %p50 = scmp.eq.s32.totalorder %s31, 0
      %p51 = por %p49, %p50
      %p52 = scmp.ne.s32.totalorder %s41, %s44
      %p53 = scmp.eq.s32.totalorder %s36, 1
      %p54 = por %p52, %p53
      %p55 = scmp.ne.s32.totalorder %s44, %s45
      %p56 = scmp.eq.s32.totalorder %s36, 0
      %p57 = por %p55, %p56
      %p58 = scmp.ne.s32.totalorder %s44, %s45
      %p59 = scmp.eq.s32.totalorder %s37, 1
      %p60 = por %p58, %p59
      %p62 = scmp.ne.s32.totalorder %s45, %s61
      %p63 = scmp.eq.s32.totalorder %s37, 0
      %p64 = por %p62, %p63
      %s66 = sadd.s32 %s65, 1
      %p69 = scmp.eq.s32.totalorder %s31, 1
      %p70 = scmp.ne.s32.totalorder %s65, %s67
      %p71 = scmp.eq.s32.totalorder %s31, 0
      %p72 = por %p70, %p71
      %p73 = scmp.ne.s32.totalorder %s65, %s67
      %p74 = scmp.eq.s32.totalorder %s36, 1
      %p75 = por %p73, %p74
      %p76 = scmp.ne.s32.totalorder %s67, %s68
      %p77 = scmp.eq.s32.totalorder %s36, 0
      %p78 = por %p76, %p77
      %p79 = scmp.ne.s32.totalorder %s67, %s68
      %p80 = scmp.eq.s32.totalorder %s37, 1
      %p81 = por %p79, %p80
      %p83 = scmp.ne.s32.totalorder %s68, %s82
      %p84 = scmp.eq.s32.totalorder %s37, 0
      %p85 = por %p83, %p84
      %s87 = sadd.s32 %s86, 1
      %p90 = scmp.eq.s32.totalorder %s31, 1
      %p91 = scmp.ne.s32.totalorder %s86, %s88
      %p92 = scmp.eq.s32.totalorder %s31, 0
      %p93 = por %p91, %p92
      %p94 = scmp.ne.s32.totalorder %s86, %s88
      %p95 = scmp.eq.s32.totalorder %s36, 1
      %p96 = por %p94, %p95
      %p97 = scmp.ne.s32.totalorder %s88, %s89
      %p98 = scmp.eq.s32.totalorder %s36, 0
      %p99 = por %p97, %p98
      %p100 = scmp.ne.s32.totalorder %s88, %s89
      %p101 = scmp.eq.s32.totalorder %s37, 1
      %p102 = por %p100, %p101
      %p104 = scmp.ne.s32.totalorder %s89, %s103
      %p105 = scmp.eq.s32.totalorder %s37, 0
      %p106 = por %p104, %p105
      %s107 = ssub.s32 %s31, %s38
      %p108 = scmp.eq.s32.totalorder %s107, 0
      %s110 = sadd.s32 %s109, 1
      %s111 = scalar_select %p108, %s109, %s110
      %p114 = pneg %p108
      %p115 = scmp.eq.s32.totalorder %s31, 1
      %p116 = por %p114, %p115
      %p117 = scmp.ne.s32.totalorder %s109, %s112
      %p118 = scmp.eq.s32.totalorder %s31, 0
      %p119 = por %p117, %p118
      %p120 = scmp.ne.s32.totalorder %s109, %s112
      %p121 = scmp.eq.s32.totalorder %s36, 1
      %p122 = por %p120, %p121
      %p123 = scmp.ne.s32.totalorder %s112, %s113
      %p124 = scmp.eq.s32.totalorder %s36, 0
      %p125 = por %p123, %p124
      %p126 = scmp.ne.s32.totalorder %s112, %s113
      %p127 = scmp.eq.s32.totalorder %s37, 1
      %p128 = por %p126, %p127
      %p130 = scmp.ne.s32.totalorder %s113, %s129
      %p131 = scmp.eq.s32.totalorder %s37, 0
      %p132 = por %p130, %p131
      %s133 = ssub.s32 %s31, %s38
      %p134 = scmp.eq.s32.totalorder %s133, 0
      %s136 = sadd.s32 %s135, 1
      %s137 = scalar_select %p134, %s135, %s136
      %p140 = pneg %p134
      %p141 = scmp.eq.s32.totalorder %s31, 1
      %p142 = por %p140, %p141
      %p143 = scmp.ne.s32.totalorder %s135, %s138
      %p144 = scmp.eq.s32.totalorder %s31, 0
      %p145 = por %p143, %p144
      %p146 = scmp.ne.s32.totalorder %s135, %s138
      %p147 = scmp.eq.s32.totalorder %s36, 1
      %p148 = por %p146, %p147
      %p149 = scmp.ne.s32.totalorder %s138, %s139
      %p150 = scmp.eq.s32.totalorder %s36, 0
      %p151 = por %p149, %p150
      %p152 = scmp.ne.s32.totalorder %s138, %s139
      %p153 = scmp.eq.s32.totalorder %s37, 1
      %p154 = por %p152, %p153
      %p156 = scmp.ne.s32.totalorder %s139, %s155
      %p157 = scmp.eq.s32.totalorder %s37, 0
      %p158 = por %p156, %p157
      %s159 = ssub.s32 %s31, %s38
      %p160 = scmp.eq.s32.totalorder %s159, 0
      %s162 = sadd.s32 %s161, 1
      %s163 = scalar_select %p160, %s161, %s162
      %p166 = pneg %p160
      %p167 = scmp.eq.s32.totalorder %s31, 1
      %p168 = por %p166, %p167
      %p169 = scmp.ne.s32.totalorder %s161, %s164
      %p170 = scmp.eq.s32.totalorder %s31, 0
      %p171 = por %p169, %p170
      %p172 = scmp.ne.s32.totalorder %s161, %s164
      %p173 = scmp.eq.s32.totalorder %s36, 1
      %p174 = por %p172, %p173
      %p175 = scmp.ne.s32.totalorder %s164, %s165
      %p176 = scmp.eq.s32.totalorder %s36, 0
      %p177 = por %p175, %p176
      %p178 = scmp.ne.s32.totalorder %s164, %s165
      %p179 = scmp.eq.s32.totalorder %s37, 1
      %p180 = por %p178, %p179
      %p182 = scmp.ne.s32.totalorder %s165, %s181
      %p183 = scmp.eq.s32.totalorder %s37, 0
      %p184 = por %p182, %p183
      %s185 = ssub.s32 %s31, %s38
      %p186 = scmp.eq.s32.totalorder %s185, 0
      %s188 = sadd.s32 %s187, 1
      %s189 = scalar_select %p186, %s187, %s188
      %p192 = pneg %p186
      %p193 = scmp.eq.s32.totalorder %s31, 1
      %p194 = por %p192, %p193
      %p195 = scmp.ne.s32.totalorder %s187, %s190
      %p196 = scmp.eq.s32.totalorder %s31, 0
      %p197 = por %p195, %p196
      %p198 = scmp.ne.s32.totalorder %s187, %s190
      %p199 = scmp.eq.s32.totalorder %s36, 1
      %p200 = por %p198, %p199
      %p201 = scmp.ne.s32.totalorder %s190, %s191
      %p202 = scmp.eq.s32.totalorder %s36, 0
      %p203 = por %p201, %p202
      %p204 = scmp.ne.s32.totalorder %s190, %s191
      %p205 = scmp.eq.s32.totalorder %s37, 1
      %p206 = por %p204, %p205
      %p208 = scmp.ne.s32.totalorder %s191, %s207
      %p209 = scmp.eq.s32.totalorder %s37, 0
      %p210 = por %p208, %p209
      %p211 = scmp.le.s32.totalorder 1, %s31
      %p212 = scmp.lt.s32.totalorder %s31, 3
      %p213 = pnand %p211, %p212
      %p214 = pneg %p213
      // Predicated region
      $region9: #{tpu_custom_call.1} parent=5 // pred_check
        _
      $region10: #{tpu_custom_call.1} parent=5 // pred_check_branch
        %216 = sbr.rel (%p213) target = $region12
      $region11: #{tpu_custom_call.1} parent=5 // pred_region
        %s217 = ssub.s32 %s31, 1
        // Predicated region
        $region13: #{tpu_custom_call.1} parent=11 // pred_check
          %p218 = pneg %p78
        $region14: #{tpu_custom_call.1} parent=11 // pred_check_branch
          %220 = sbr.rel (%p218) target = $region16
        $region15: #{tpu_custom_call.1} parent=11 // pred_region
          _
        $region16: #{tpu_custom_call.1} parent=11 // pred_fallthru
          _
        // Predicated region
        $region17: #{tpu_custom_call.1} parent=11 // pred_check
          %p221 = pneg %p99
        $region18: #{tpu_custom_call.1} parent=11 // pred_check_branch
          %223 = sbr.rel (%p221) target = $region20
        $region19: #{tpu_custom_call.1} parent=11 // pred_region
          _
        $region20: #{tpu_custom_call.1} parent=11 // pred_fallthru
          _
      $region12: #{tpu_custom_call.1} parent=5 // pred_fallthru
        _
      %p224 = scmp.lt.s32.totalorder %s31, 2
      // Predicated region
      $region21: #{tpu_custom_call.1} parent=5 // pred_check
        %p225 = pneg %p224
      $region22: #{tpu_custom_call.1} parent=5 // pred_check_branch
        %227 = sbr.rel (%p225) target = $region24
      $region23: #{tpu_custom_call.1} parent=5 // pred_region
        // Predicated region
        $region25: #{tpu_custom_call.1} parent=23 // pred_check
          %p228 = pneg %p51
        $region26: #{tpu_custom_call.1} parent=23 // pred_check_branch
          %230 = sbr.rel (%p228) target = $region28
        $region27: #{tpu_custom_call.1} parent=23 // pred_region
          %p231 = scmp.lt.s32.totalorder %s31, 1
          %s232 = scalar_select %p231, %s31, 1
          %s233 = smul.addr %s232, 4
          %s234 = smul.addr %s233, 8
          %s235 = scalar_lea.vmem %s1, %s234
        $region28: #{tpu_custom_call.1} parent=23 // pred_fallthru
          _
        // Predicated region
        $region29: #{tpu_custom_call.1} parent=23 // pred_check
          %p236 = pneg %p119
        $region30: #{tpu_custom_call.1} parent=23 // pred_check_branch
          %238 = sbr.rel (%p236) target = $region32
        $region31: #{tpu_custom_call.1} parent=23 // pred_region
          %p239 = scmp.lt.s32.totalorder %s31, 1
          %s240 = scalar_select %p239, %s31, 1
          %s241 = smul.addr %s240, 2
          %s242 = smul.addr %s241, 8
          %s243 = scalar_lea.vmem %s4, %s242
        $region32: #{tpu_custom_call.1} parent=23 // pred_fallthru
          _
        // Predicated region
        $region33: #{tpu_custom_call.1} parent=23 // pred_check
          %p244 = pneg %p145
        $region34: #{tpu_custom_call.1} parent=23 // pred_check_branch
          %246 = sbr.rel (%p244) target = $region36
        $region35: #{tpu_custom_call.1} parent=23 // pred_region
          %s247 = sand.u32 %s135, 1
          %s248 = scalar_lea.sflag [#allocation5], %s247
          %s249 = sand.u32 %s135, 1
          %s250 = smul.addr %s249, 512
          %s251 = scalar_lea.vmem [#allocation4], %s250
          %253 = vsyncadd %s248, 0
          %s254 = smul.addr %s31, 64
          %s255 = smul.addr %s254, 8
          %s256 = scalar_lea.hbm %s5, %s255
          %s257 = sshll.u32 %s256, 4
          %s258 = int_to_ptr.hbm [resolvable:$true] %s257
          %s259 = sshll.u32 %s251, 4
          %s260 = int_to_ptr.vmem [resolvable:$true] %s259
          %265 = dma.hbm_to_vmem [thread:$0]  %s258, 8192, %s260, %s248, 512, 512, 32
        $region36: #{tpu_custom_call.1} parent=23 // pred_fallthru
          _
      $region24: #{tpu_custom_call.1} parent=5 // pred_fallthru
        _
      %p266 = scmp.le.s32.totalorder 1, %s31
      %p267 = scmp.lt.s32.totalorder %s31, 3
      %p268 = pnand %p266, %p267
      %p269 = pneg %p268
      // Predicated region
      $region37: #{tpu_custom_call.1} parent=5 // pred_check
        _
      $region38: #{tpu_custom_call.1} parent=5 // pred_check_branch
        %271 = sbr.rel (%p268) target = $region40
      $region39: #{tpu_custom_call.1} parent=5 // pred_region
        %s272 = ssub.s32 %s31, 1
        %s273 = sand.u32 %s138, 1
        %s274 = scalar_lea.sflag [#allocation5], %s273
        %s275 = sand.u32 %s138, 1
        %s276 = smul.addr %s275, 512
        %s277 = scalar_lea.vmem [#allocation4], %s276
        // Predicated region
        $region41: #{tpu_custom_call.1} parent=39 // pred_check
          %p278 = pneg %p151
        $region42: #{tpu_custom_call.1} parent=39 // pred_check_branch
          %280 = sbr.rel (%p278) target = $region44
        $region43: #{tpu_custom_call.1} parent=39 // pred_region
          %282 = dma.done %s274, 8192
        $region44: #{tpu_custom_call.1} parent=39 // pred_fallthru
          _
        %p283 = scmp.lt.s32.totalorder %s36, 1
        %s284 = scalar_select %p283, %s36, 1
        %s285 = smul.addr %s284, 4
        %s286 = smul.addr %s285, 8
        %s287 = scalar_lea.vmem %s1, %s286
        %p288 = pneg %p57
        %p289 = pneg %p54
        %p290 = pneg %p78
        %p291 = pneg %p75
        %p292 = pneg %p99
        %p293 = pneg %p96
        %p294 = scmp.lt.s32.totalorder %s36, 1
        %s295 = scalar_select %p294, %s36, 1
        %s296 = smul.addr %s295, 2
        %s297 = smul.addr %s296, 8
        %s298 = scalar_lea.vmem %s4, %s297
        %p299 = pneg %p125
        %p300 = pneg %p122
        %s301 = sand.u32 %s138, 1
        %s302 = scalar_lea.sflag [#allocation5], %s301
        %s303 = sand.u32 %s138, 1
        %s304 = smul.addr %s303, 512
        %s305 = scalar_lea.vmem [#allocation4], %s304
        %p306 = pneg %p151
        %p307 = pneg %p148
        %p308 = pneg %p177
        %p309 = pneg %p174
        %s310 = sand.u32 %s164, 1
        %s311 = scalar_lea.sflag [#allocation6], %s310
        %s312 = sand.u32 %s164, 1
        %s313 = smul.addr %s312, 4
        %s314 = scalar_lea.vmem [#allocation7], %s313
        %p315 = pneg %p203
        %p316 = pneg %p200
        %s317 = sand.u32 %s190, 1
        %s318 = scalar_lea.sflag [#allocation9], %s317
        %s319 = sand.u32 %s190, 1
        %s320 = scalar_lea.vmem [#allocation8], %s319
        %p321 = scmp.lt.s32.totalorder %s36, 1
        %s322 = scalar_select %p321, %s36, 1
        %s323 = smul.addr %s322, 4
        %s324 = smul.addr %s323, 8
        %s325 = scalar_lea.vmem %s1, %s324
        %p326 = scmp.lt.s32.totalorder %s36, 1
        %s327 = scalar_select %p326, %s36, 1
        %s328 = smul.addr %s327, 2
        %s329 = smul.addr %s328, 8
        %s330 = scalar_lea.vmem %s4, %s329
        %s331 = sld [smem:[#allocation3 + %s36]]
        %v332 = vld [vmem:[%s2] sm:$0xff]
        %v333 = vld [vmem:[%s2 + $0x8] sm:$0xff]
        %v334 = vld [vmem:[%s325] sm:$0xff]
        %v335 = vld [vmem:[%s325 + $0x8] sm:$0xff]
        %v336 = vld [vmem:[%s325 + $0x10] sm:$0xff]
        %v337 = vld [vmem:[%s325 + $0x18] sm:$0xff]
        %vm338 = vcmask 261120
        %v340 = vsel %vm338, %v332, 0
        %v343 = vsel %vm338, %v333, 0
        %345 = vmatpush.msra.mxu0 0.0
        %346 = vmatpush.msra.mxu0 0.0
        %347 = vmatpush.msra.mxu0 0.0
        %348 = vmatpush.msra.mxu0 0.0
        %349 = vmatpush.msra.mxu0 0.0
        %350 = vmatpush.msra.mxu0 0.0
        %351 = vmatpush.msra.mxu0 0.0
        %352 = vmatpush.msra.mxu0 0.0
        %353 = vmatpush.msra.mxu0 0.0
        %354 = vmatpush.msra.mxu0 0.0
        %355 = vmatpush.msra.mxu0 0.0
        %356 = vmatpush.msra.mxu0 0.0
        %357 = vmatpush.msra.mxu0 %v337
        %358 = vmatpush.msra.mxu0 %v336
        %359 = vmatpush.msra.mxu0 %v335
        %360 = vmatpush.msra.mxu0 %v334
        %361 = vmatmul.f32.gmra.mxu0 %v340
        %v362 = vpop.f32.mrf.mxu0
        %v363 = vadd.f32 0.0, %v362
        %364 = vmatmul.f32.gmra.mxu0 %v343
        %v365 = vpop.f32.mrf.mxu0
        %v366 = vadd.f32 0.0, %v365
        %367 = vdwg.mxu0
        %v368 = vld [vmem:[%s330] sm:$0xff]
        %v369 = vld [vmem:[%s330 + $0x8] sm:$0xff]
        %371 = vset.pattern.permute.xlu0 0
        %372 = vperm.xlu0 %371, %v363
        %v373 = vpop.permute.xlu0 %372
        %376 = vset.pattern.permute.xlu0 0
        %377 = vperm.xlu0 %376, %v366
        %v378 = vpop.permute.xlu0 %377
        %v380 = vadd.f32 %v373, %v368
        %v381 = vadd.f32 %v378, %v369
        %v382 = vtanh.pop %v380
        %v383 = vtanh.pop %v381
        %v384 = vld [vmem:[%s3] sm:$0x1]
        %vm385 = vcmask 130048
        %v387 = vsel %vm385, %v384, 0
        %389 = vmatpush.msra.mxu0 0.0
        %390 = vmatpush.msra.mxu0 0.0
        %391 = vmatpush.msra.mxu0 0.0
        %392 = vmatpush.msra.mxu0 0.0
        %393 = vmatpush.msra.mxu0 0.0
        %394 = vmatpush.msra.mxu0 0.0
        %395 = vmatpush.msra.mxu0 0.0
        %396 = vmatpush.msra.mxu0 0.0
        %397 = vmatpush.msra.mxu0 0.0
        %398 = vmatpush.msra.mxu0 0.0
        %399 = vmatpush.msra.mxu0 0.0
        %400 = vmatpush.msra.mxu0 0.0
        %401 = vmatpush.msra.mxu0 0.0
        %402 = vmatpush.msra.mxu0 0.0
        %403 = vmatpush.msra.mxu0 %v383
        %404 = vmatpush.msra.mxu0 %v382
        %405 = vmatmul.f32.gmra.mxu0 %v387
        %v406 = vpop.f32.mrf.mxu0
        %v407 = vadd.f32 0.0, %v406
        %408 = vdwg.mxu0
        %v409 = vlaneseq
        %v410 = vand.u32 %v409, 127
        %v411 = vstv %s331
        %vm412 = vcmp.ge.s32.totalorder %v410, %v411
        %v413 = vsel %vm412, -1e+30, %v407
        %vm414 = vcmask 1040384
        %v415 = vsel %vm414, %v413, -inf
        %416 = vmax.xlane.f32.xlu0 %v415
        %v417 = vpop.xlane.xlu0 %416
        %v418 = vsub.f32 %v413, %v417
        %v419 = vmul.f32 %v418, 1.442695
        %v420 = vpow.pop %v419
        %v421 = vsel %vm414, %v420, 0.0
        %422 = vadd.xlane.f32.xlu0 %v421
        %v423 = vpop.xlane.xlu0 %422
        %v424 = vrcp.pop %v423
        %v425 = vmul.f32 %v423, %v424
        %v426 = vsub.f32 2.0, %v425
        %v427 = vmul.f32 %v424, %v426
        %v428 = vmul.f32 %v420, %v427
        %429 = vst [vmem:[%s320] sm:$0x1] %v428
        %v430 = vld [vmem:[%s277] sm:$0xff]
        %v431 = vld [vmem:[%s277 + $0x8] sm:$0xff]
        %v432 = vld [vmem:[%s277 + $0x10] sm:$0xff]
        %v433 = vld [vmem:[%s277 + $0x18] sm:$0xff]
        %v434 = vld [vmem:[%s277 + $0x20] sm:$0xff]
        %v435 = vld [vmem:[%s277 + $0x28] sm:$0xff]
        %v436 = vld [vmem:[%s277 + $0x30] sm:$0xff]
        %v437 = vld [vmem:[%s277 + $0x38] sm:$0xff]
        %v438 = vld [vmem:[%s277 + $0x40] sm:$0xff]
        %v439 = vld [vmem:[%s277 + $0x48] sm:$0xff]
        %v440 = vld [vmem:[%s277 + $0x50] sm:$0xff]
        %v441 = vld [vmem:[%s277 + $0x58] sm:$0xff]
        %v442 = vld [vmem:[%s277 + $0x60] sm:$0xff]
        %v443 = vld [vmem:[%s277 + $0x68] sm:$0xff]
        %v444 = vld [vmem:[%s277 + $0x70] sm:$0xff]
        %v445 = vld [vmem:[%s277 + $0x78] sm:$0xff]
        %v446 = vld [vmem:[%s277 + $0x80] sm:$0xff]
        %v447 = vld [vmem:[%s277 + $0x88] sm:$0xff]
        %v448 = vld [vmem:[%s277 + $0x90] sm:$0xff]
        %v449 = vld [vmem:[%s277 + $0x98] sm:$0xff]
        %v450 = vld [vmem:[%s277 + $0xa0] sm:$0xff]
        %v451 = vld [vmem:[%s277 + $0xa8] sm:$0xff]
        %v452 = vld [vmem:[%s277 + $0xb0] sm:$0xff]
        %v453 = vld [vmem:[%s277 + $0xb8] sm:$0xff]
        %v454 = vld [vmem:[%s277 + $0xc0] sm:$0xff]
        %v455 = vld [vmem:[%s277 + $0xc8] sm:$0xff]
        %v456 = vld [vmem:[%s277 + $0xd0] sm:$0xff]
        %v457 = vld [vmem:[%s277 + $0xd8] sm:$0xff]
        %v458 = vld [vmem:[%s277 + $0xe0] sm:$0xff]
        %v459 = vld [vmem:[%s277 + $0xe8] sm:$0xff]
        %v460 = vld [vmem:[%s277 + $0xf0] sm:$0xff]
        %v461 = vld [vmem:[%s277 + $0xf8] sm:$0xff]
        %v462 = vld [vmem:[%s277 + $0x100] sm:$0xff]
        %v463 = vld [vmem:[%s277 + $0x108] sm:$0xff]
        %v464 = vld [vmem:[%s277 + $0x110] sm:$0xff]
        %v465 = vld [vmem:[%s277 + $0x118] sm:$0xff]
        %v466 = vld [vmem:[%s277 + $0x120] sm:$0xff]
        %v467 = vld [vmem:[%s277 + $0x128] sm:$0xff]
        %v468 = vld [vmem:[%s277 + $0x130] sm:$0xff]
        %v469 = vld [vmem:[%s277 + $0x138] sm:$0xff]
        %v470 = vld [vmem:[%s277 + $0x140] sm:$0xff]
        %v471 = vld [vmem:[%s277 + $0x148] sm:$0xff]
        %v472 = vld [vmem:[%s277 + $0x150] sm:$0xff]
        %v473 = vld [vmem:[%s277 + $0x158] sm:$0xff]
        %v474 = vld [vmem:[%s277 + $0x160] sm:$0xff]
        %v475 = vld [vmem:[%s277 + $0x168] sm:$0xff]
        %v476 = vld [vmem:[%s277 + $0x170] sm:$0xff]
        %v477 = vld [vmem:[%s277 + $0x178] sm:$0xff]
        %v478 = vld [vmem:[%s277 + $0x180] sm:$0xff]
        %v479 = vld [vmem:[%s277 + $0x188] sm:$0xff]
        %v480 = vld [vmem:[%s277 + $0x190] sm:$0xff]
        %v481 = vld [vmem:[%s277 + $0x198] sm:$0xff]
        %v482 = vld [vmem:[%s277 + $0x1a0] sm:$0xff]
        %v483 = vld [vmem:[%s277 + $0x1a8] sm:$0xff]
        %v484 = vld [vmem:[%s277 + $0x1b0] sm:$0xff]
        %v485 = vld [vmem:[%s277 + $0x1b8] sm:$0xff]
        %v486 = vld [vmem:[%s277 + $0x1c0] sm:$0xff]
        %v487 = vld [vmem:[%s277 + $0x1c8] sm:$0xff]
        %v488 = vld [vmem:[%s277 + $0x1d0] sm:$0xff]
        %v489 = vld [vmem:[%s277 + $0x1d8] sm:$0xff]
        %v490 = vld [vmem:[%s277 + $0x1e0] sm:$0xff]
        %v491 = vld [vmem:[%s277 + $0x1e8] sm:$0xff]
        %v492 = vld [vmem:[%s277 + $0x1f0] sm:$0xff]
        %v493 = vld [vmem:[%s277 + $0x1f8] sm:$0xff]
        %494 = vmatpush.msra.mxu0 %v490
        %495 = vmatpush.msra.mxu0 %v486
        %496 = vmatpush.msra.mxu0 %v482
        %497 = vmatpush.msra.mxu0 %v478
        %498 = vmatpush.msra.mxu0 %v474
        %499 = vmatpush.msra.mxu0 %v470
        %500 = vmatpush.msra.mxu0 %v466
        %501 = vmatpush.msra.mxu0 %v462
        %502 = vmatpush.msra.mxu0 %v458
        %503 = vmatpush.msra.mxu0 %v454
        %504 = vmatpush.msra.mxu0 %v450
        %505 = vmatpush.msra.mxu0 %v446
        %506 = vmatpush.msra.mxu0 %v442
        %507 = vmatpush.msra.mxu0 %v438
        %508 = vmatpush.msra.mxu0 %v434
        %509 = vmatpush.msra.mxu0 %v430
        %510 = vmatmul.f32.gmra.mxu0 %v428
        %v511 = vpop.f32.mrf.mxu0
        %v512 = vadd.f32 0.0, %v511
        %513 = vdwg.mxu0
        %514 = vmatpush.msra.mxu0 %v491
        %515 = vmatpush.msra.mxu0 %v487
        %516 = vmatpush.msra.mxu0 %v483
        %517 = vmatpush.msra.mxu0 %v479
        %518 = vmatpush.msra.mxu0 %v475
        %519 = vmatpush.msra.mxu0 %v471
        %520 = vmatpush.msra.mxu0 %v467
        %521 = vmatpush.msra.mxu0 %v463
        %522 = vmatpush.msra.mxu0 %v459
        %523 = vmatpush.msra.mxu0 %v455
        %524 = vmatpush.msra.mxu0 %v451
        %525 = vmatpush.msra.mxu0 %v447
        %526 = vmatpush.msra.mxu0 %v443
        %527 = vmatpush.msra.mxu0 %v439
        %528 = vmatpush.msra.mxu0 %v435
        %529 = vmatpush.msra.mxu0 %v431
        %530 = vmatmul.f32.gmra.mxu0 %v428
        %v531 = vpop.f32.mrf.mxu0
        %v532 = vadd.f32 0.0, %v531
        %533 = vdwg.mxu0
        %534 = vmatpush.msra.mxu0 %v492
        %535 = vmatpush.msra.mxu0 %v488
        %536 = vmatpush.msra.mxu0 %v484
        %537 = vmatpush.msra.mxu0 %v480
        %538 = vmatpush.msra.mxu0 %v476
        %539 = vmatpush.msra.mxu0 %v472
        %540 = vmatpush.msra.mxu0 %v468
        %541 = vmatpush.msra.mxu0 %v464
        %542 = vmatpush.msra.mxu0 %v460
        %543 = vmatpush.msra.mxu0 %v456
        %544 = vmatpush.msra.mxu0 %v452
        %545 = vmatpush.msra.mxu0 %v448
        %546 = vmatpush.msra.mxu0 %v444
        %547 = vmatpush.msra.mxu0 %v440
        %548 = vmatpush.msra.mxu0 %v436
        %549 = vmatpush.msra.mxu0 %v432
        %550 = vmatmul.f32.gmra.mxu0 %v428
        %v551 = vpop.f32.mrf.mxu0
        %v552 = vadd.f32 0.0, %v551
        %553 = vdwg.mxu0
        %554 = vmatpush.msra.mxu0 %v493
        %555 = vmatpush.msra.mxu0 %v489
        %556 = vmatpush.msra.mxu0 %v485
        %557 = vmatpush.msra.mxu0 %v481
        %558 = vmatpush.msra.mxu0 %v477
        %559 = vmatpush.msra.mxu0 %v473
        %560 = vmatpush.msra.mxu0 %v469
        %561 = vmatpush.msra.mxu0 %v465
        %562 = vmatpush.msra.mxu0 %v461
        %563 = vmatpush.msra.mxu0 %v457
        %564 = vmatpush.msra.mxu0 %v453
        %565 = vmatpush.msra.mxu0 %v449
        %566 = vmatpush.msra.mxu0 %v445
        %567 = vmatpush.msra.mxu0 %v441
        %568 = vmatpush.msra.mxu0 %v437
        %569 = vmatpush.msra.mxu0 %v433
        %570 = vmatmul.f32.gmra.mxu0 %v428
        %v571 = vpop.f32.mrf.mxu0
        %v572 = vadd.f32 0.0, %v571
        %573 = vdwg.mxu0
        %v578 = vrot.slane %v532, 7
        %v579 = vrot.slane %v552, 6
        %v580 = vrot.slane %v572, 5
        %v581 = vsel %vm414, %v512, %v578
        %vm582 = vcmask 1042434
        %v583 = vsel %vm582, %v579, %v580
        %vm584 = vcmask 1041408
        %v585 = vsel %vm584, %v581, %v583
        %v587 = vlaneseq
        %vm588 = vcmp.ge.s32.totalorder %v587, 0
        %vm589 = vcmp.lt.s32.totalorder %v587, 512
        %vm590 = vmand %vm588, %vm589
        %591 = vst.msk [vmem:[%s314] sm:$0xf] %vm590, %v585
        %s592 = sand.u32 %s164, 1
        %s593 = scalar_lea.sflag [#allocation6], %s592
        %s594 = sand.u32 %s164, 1
        %s595 = smul.addr %s594, 4
        %s596 = scalar_lea.vmem [#allocation7], %s595
        %s597 = sand.u32 %s190, 1
        %s598 = scalar_lea.sflag [#allocation9], %s597
        %s599 = sand.u32 %s190, 1
        %s600 = scalar_lea.vmem [#allocation8], %s599
        // Predicated region
        $region45: #{tpu_custom_call.1} parent=39 // pred_check
          %p601 = pneg %p174
        $region46: #{tpu_custom_call.1} parent=39 // pred_check_branch
          %603 = sbr.rel (%p601) target = $region48
        $region47: #{tpu_custom_call.1} parent=39 // pred_region
          %605 = vsyncadd %s593, 0
          %s606 = smul.addr %s36, 4
          %s607 = scalar_lea.hbm %s6, %s606
          %s609 = sshll.u32 %s596, 4
          %s610 = int_to_ptr.vmem [resolvable:$true] %s609
          %s611 = sshll.u32 %s607, 4
          %s612 = int_to_ptr.hbm [resolvable:$true] %s611
          %614 = dma.vmem_to_hbm [thread:$0]  %s610, 64, %s612, %s593
        $region48: #{tpu_custom_call.1} parent=39 // pred_fallthru
          _
        // Predicated region
        $region49: #{tpu_custom_call.1} parent=39 // pred_check
          %p615 = pneg %p200
        $region50: #{tpu_custom_call.1} parent=39 // pred_check_branch
          %617 = sbr.rel (%p615) target = $region52
        $region51: #{tpu_custom_call.1} parent=39 // pred_region
          %619 = vsyncadd %s598, 0
          %s620 = scalar_lea.hbm %s7, %s36
          %s622 = sshll.u32 %s600, 4
          %s623 = int_to_ptr.vmem [resolvable:$true] %s622
          %s624 = sshll.u32 %s620, 4
          %s625 = int_to_ptr.hbm [resolvable:$true] %s624
          %627 = dma.vmem_to_hbm [thread:$0]  %s623, 16, %s625, %s598
        $region52: #{tpu_custom_call.1} parent=39 // pred_fallthru
          _
      $region40: #{tpu_custom_call.1} parent=5 // pred_fallthru
        _
      %p628 = scmp.le.s32.totalorder 2, %s31
      // Predicated region
      $region53: #{tpu_custom_call.1} parent=5 // pred_check
        %p629 = pneg %p628
      $region54: #{tpu_custom_call.1} parent=5 // pred_check_branch
        %631 = sbr.rel (%p629) target = $region56
      $region55: #{tpu_custom_call.1} parent=5 // pred_region
        %s632 = ssub.s32 %s31, 2
        // Predicated region
        $region57: #{tpu_custom_call.1} parent=55 // pred_check
          %p633 = pneg %p180
        $region58: #{tpu_custom_call.1} parent=55 // pred_check_branch
          %635 = sbr.rel (%p633) target = $region60
        $region59: #{tpu_custom_call.1} parent=55 // pred_region
          %s636 = sand.u32 %s165, 1
          %s637 = scalar_lea.sflag [#allocation6], %s636
          %s638 = sand.u32 %s165, 1
          %s639 = smul.addr %s638, 4
          %s640 = scalar_lea.vmem [#allocation7], %s639
          %642 = dma.done %s637, 64
        $region60: #{tpu_custom_call.1} parent=55 // pred_fallthru
          _
        // Predicated region
        $region61: #{tpu_custom_call.1} parent=55 // pred_check
          %p643 = pneg %p206
        $region62: #{tpu_custom_call.1} parent=55 // pred_check_branch
          %645 = sbr.rel (%p643) target = $region64
        $region63: #{tpu_custom_call.1} parent=55 // pred_region
          %s646 = sand.u32 %s191, 1
          %s647 = scalar_lea.sflag [#allocation9], %s646
          %s648 = sand.u32 %s191, 1
          %s649 = scalar_lea.vmem [#allocation8], %s648
          %651 = dma.done %s647, 16
        $region64: #{tpu_custom_call.1} parent=55 // pred_fallthru
          _
      $region56: #{tpu_custom_call.1} parent=5 // pred_fallthru
        _
    $region6: #{tpu_custom_call.1} parent=1 // loop_footer
      %s35 = sadd.s32 1, %s31
    $region7: #{tpu_custom_call.1} parent=1 // loop_footer_branch
      %30 = sbr.rel target = $region3
    $region8: #{tpu_custom_call.1} parent=1 // loop_exit
      _
    %652 = vsyncpa [#allocation5], 1
    %s653 = scalar_lea.sflag [#allocation5], 1
    %654 = vsyncpa %s653, 1
    %655 = vsyncpa [#allocation6], 1
    %s656 = scalar_lea.sflag [#allocation6], 1
    %657 = vsyncpa %s656, 1
    %658 = vsyncpa [#allocation9], 1
    %s659 = scalar_lea.sflag [#allocation9], 1
    %660 = vsyncpa %s659, 1

</llo_original>
